<compile_context>
chip_gen: v5e
topology: v5e:2x2
jax: 0.10.0
libtpu: 0.0.40
codegen_flags: <defaults>
</compile_context>

<pallas_src>
import math

import jax
import jax.numpy as jnp
from jax.experimental import pallas as pl
from jax.experimental.pallas import tpu as pltpu


def _mlp_kernel(x_ref, w1_ref, b1_ref, w2_ref, b2_ref, w3_ref, b3_ref,
                w4_ref, b4_ref, o_ref):
    # x_ref: (TM, D_in); w_k: (D_{k-1}, D_k) in "x @ W" layout; b_k: (1, D_k)
    h = jnp.dot(x_ref[...], w1_ref[...], preferred_element_type=jnp.float32)
    h = jnp.maximum(h + b1_ref[...], 0.0)
    h = jnp.dot(h.astype(w2_ref.dtype), w2_ref[...],
                preferred_element_type=jnp.float32)
    h = jnp.maximum(h + b2_ref[...], 0.0)
    h = jnp.dot(h.astype(w3_ref.dtype), w3_ref[...],
                preferred_element_type=jnp.float32)
    h = jnp.maximum(h + b3_ref[...], 0.0)
    out = jnp.dot(h.astype(w4_ref.dtype), w4_ref[...],
                  preferred_element_type=jnp.float32)
    o_ref[...] = (out + b4_ref[...]).astype(o_ref.dtype)


def _round_up(x, m):
    return ((x + m - 1) // m) * m


def simple_bc_forward(x, w1, b1, w2, b2, w3, b3, w4, b4, *, tile_m=256):
    """Forward pass of SimpleBCModel.

    x:        (..., input_dim) float32
    w_k, b_k: PyTorch nn.Linear layout — w_k is (out_features, in_features),
              b_k is (out_features,).
    returns   (..., output_dim)
    """
    lead = x.shape[:-1]
    d_in = x.shape[-1]
    hidden = w1.shape[0]
    d_out = w4.shape[0]

    m = 1
    for s in lead:
        m *= int(s)
    x2 = x.reshape(m, d_in)

    # (out, in) -> (in, out) so the kernel computes row-major x @ W.
    w1t, w2t, w3t, w4t = w1.T, w2.T, w3.T, w4.T
    b1r = b1.reshape(1, hidden)
    b2r = b2.reshape(1, hidden)
    b3r = b3.reshape(1, hidden)
    b4r = b4.reshape(1, d_out)

    # Row tile: multiple of 8 (sublane), capped by tile_m; pad M up to it so
    # every grid step sees a full block (pad rows are discarded at the end).
    tm = min(tile_m, _round_up(m, 8))
    m_pad = _round_up(m, tm)
    if m_pad != m:
        x2 = jnp.pad(x2, ((0, m_pad - m), (0, 0)))
    grid = (m_pad // tm,)

    flops = 2 * m_pad * (d_in * hidden + 2 * hidden * hidden + hidden * d_out)
    bytes_accessed = 4 * (m_pad * d_in + m_pad * d_out
                          + d_in * hidden + 2 * hidden * hidden
                          + hidden * d_out + 3 * hidden + d_out)

    const = lambda i: (0, 0)
    out_pad = pl.pallas_call(
        _mlp_kernel,
        out_shape=jax.ShapeDtypeStruct((m_pad, d_out), x.dtype),
        grid=grid,
        in_specs=[
            pl.BlockSpec((tm, d_in), lambda i: (i, 0)),      # activation stream
            pl.BlockSpec((d_in, hidden), const),             # W1 (VMEM-resident)
            pl.BlockSpec((1, hidden), const),                # b1
            pl.BlockSpec((hidden, hidden), const),           # W2
            pl.BlockSpec((1, hidden), const),                # b2
            pl.BlockSpec((hidden, hidden), const),           # W3
            pl.BlockSpec((1, hidden), const),                # b3
            pl.BlockSpec((hidden, d_out), const),            # W4
            pl.BlockSpec((1, d_out), const),                 # b4
        ],
        out_specs=pl.BlockSpec((tm, d_out), lambda i: (i, 0)),
        compiler_params=pltpu.CompilerParams(
            dimension_semantics=("parallel",)),
        cost_estimate=pl.CostEstimate(
            flops=flops, transcendentals=0, bytes_accessed=bytes_accessed),
    )(x2, w1t, b1r, w2t, b2r, w3t, b3r, w4t, b4r)

    return out_pad[:m].reshape(*lead, d_out)


def _reference_mlp(x, w1, b1, w2, b2, w3, b3, w4, b4):
    h = jnp.maximum(x @ w1.T + b1, 0.0)
    h = jnp.maximum(h @ w2.T + b2, 0.0)
    h = jnp.maximum(h @ w3.T + b3, 0.0)
    return h @ w4.T + b4


if __name__ == "__main__":
    input_dim, hidden_dim, output_dim = 16, 32, 8
    batch = 2

    key = jax.random.PRNGKey(0)
    keys = jax.random.split(key, 9)

    def linear_init(kw, kb, fan_in, fan_out):
        # Deterministic init mimicking PyTorch nn.Linear default (U[-1/sqrt(fan_in), ...]).
        bound = 1.0 / math.sqrt(fan_in)
        w = jax.random.uniform(kw, (fan_out, fan_in), jnp.float32, -bound, bound)
        b = jax.random.uniform(kb, (fan_out,), jnp.float32, -bound, bound)
        return w, b

    w1, b1 = linear_init(keys[0], keys[1], input_dim, hidden_dim)
    w2, b2 = linear_init(keys[2], keys[3], hidden_dim, hidden_dim)
    w3, b3 = linear_init(keys[4], keys[5], hidden_dim, hidden_dim)
    w4, b4 = linear_init(keys[6], keys[7], hidden_dim, output_dim)
    x = jax.random.normal(keys[8], (batch, input_dim), jnp.float32)

    out = simple_bc_forward(x, w1, b1, w2, b2, w3, b3, w4, b4)
    out = jax.block_until_ready(out)

    ref = _reference_mlp(x, w1, b1, w2, b2, w3, b3, w4, b4)
    assert out.shape == ref.shape == (batch, output_dim), (out.shape, ref.shape)
    assert jnp.allclose(out, ref, atol=1e-5, rtol=1e-5), "mismatch vs JAX reference"

    print("KERNEL_OK")
</pallas_src>

<mosaic_0001>
module attributes {stable_mosaic.version = 11 : i64} {
  func.func @_mlp_kernel(%arg0: i32, %arg1: memref<8x16xf32, #tpu.memory_space<vmem>>, %arg2: memref<16x32xf32, #tpu.memory_space<vmem>>, %arg3: memref<1x32xf32, #tpu.memory_space<vmem>>, %arg4: memref<32x32xf32, #tpu.memory_space<vmem>>, %arg5: memref<1x32xf32, #tpu.memory_space<vmem>>, %arg6: memref<32x32xf32, #tpu.memory_space<vmem>>, %arg7: memref<1x32xf32, #tpu.memory_space<vmem>>, %arg8: memref<32x8xf32, #tpu.memory_space<vmem>>, %arg9: memref<1x8xf32, #tpu.memory_space<vmem>>, %arg10: memref<8x8xf32, #tpu.memory_space<vmem>>) attributes {dimension_semantics = [#tpu.dimension_semantics<parallel>], iteration_bounds = array<i64: 1>, scalar_prefetch = 0 : i64, scratch_operands = 0 : i64, tpu.core_type = #tpu.core_type<tc>, window_params = [{transform_indices = @transform_0, window_bounds = array<i64: 8, 16>}, {pipeline_mode = #tpu.pipeline_mode<synchronous>, transform_indices = @transform_1, window_bounds = array<i64: 16, 32>}, {pipeline_mode = #tpu.pipeline_mode<synchronous>, transform_indices = @transform_2, window_bounds = array<i64: 1, 32>}, {pipeline_mode = #tpu.pipeline_mode<synchronous>, transform_indices = @transform_3, window_bounds = array<i64: 32, 32>}, {pipeline_mode = #tpu.pipeline_mode<synchronous>, transform_indices = @transform_4, window_bounds = array<i64: 1, 32>}, {pipeline_mode = #tpu.pipeline_mode<synchronous>, transform_indices = @transform_5, window_bounds = array<i64: 32, 32>}, {pipeline_mode = #tpu.pipeline_mode<synchronous>, transform_indices = @transform_6, window_bounds = array<i64: 1, 32>}, {pipeline_mode = #tpu.pipeline_mode<synchronous>, transform_indices = @transform_7, window_bounds = array<i64: 32, 8>}, {pipeline_mode = #tpu.pipeline_mode<synchronous>, transform_indices = @transform_8, window_bounds = array<i64: 1, 8>}, {transform_indices = @transform_9, window_bounds = array<i64: 8, 8>}]} {
    %c0 = arith.constant 0 : index
    %c0_0 = arith.constant 0 : index
    %0 = vector.load %arg1[%c0, %c0_0] : memref<8x16xf32, #tpu.memory_space<vmem>>, vector<8x16xf32>
    %c0_1 = arith.constant 0 : index
    %c0_2 = arith.constant 0 : index
    %1 = vector.load %arg2[%c0_1, %c0_2] : memref<16x32xf32, #tpu.memory_space<vmem>>, vector<16x32xf32>
    %cst = arith.constant dense<0.000000e+00> : vector<8x32xf32>
    %2 = tpu.matmul %0, %1, %cst {dimension_numbers = #tpu.dot_dimension_numbers<[1], [0], [0], [1], [0, 0, 1, 1], [], []>} : vector<8x16xf32>, vector<16x32xf32>, vector<8x32xf32> -> vector<8x32xf32>
    %c0_3 = arith.constant 0 : index
    %c0_4 = arith.constant 0 : index
    %3 = vector.load %arg3[%c0_3, %c0_4] : memref<1x32xf32, #tpu.memory_space<vmem>>, vector<1x32xf32>
    %4 = vector.broadcast %3 : vector<1x32xf32> to vector<8x32xf32>
    %5 = arith.addf %2, %4 : vector<8x32xf32>
    %cst_5 = arith.constant 0.000000e+00 : f32
    %6 = vector.broadcast %cst_5 : f32 to vector<8x32xf32>
    %7 = arith.maximumf %5, %6 : vector<8x32xf32>
    %c0_6 = arith.constant 0 : index
    %c0_7 = arith.constant 0 : index
    %8 = vector.load %arg4[%c0_6, %c0_7] : memref<32x32xf32, #tpu.memory_space<vmem>>, vector<32x32xf32>
    %cst_8 = arith.constant dense<0.000000e+00> : vector<8x32xf32>
    %9 = tpu.matmul %7, %8, %cst_8 {dimension_numbers = #tpu.dot_dimension_numbers<[1], [0], [0], [1], [0, 0, 1, 1], [], []>} : vector<8x32xf32>, vector<32x32xf32>, vector<8x32xf32> -> vector<8x32xf32>
    %c0_9 = arith.constant 0 : index
    %c0_10 = arith.constant 0 : index
    %10 = vector.load %arg5[%c0_9, %c0_10] : memref<1x32xf32, #tpu.memory_space<vmem>>, vector<1x32xf32>
    %11 = vector.broadcast %10 : vector<1x32xf32> to vector<8x32xf32>
    %12 = arith.addf %9, %11 : vector<8x32xf32>
    %cst_11 = arith.constant 0.000000e+00 : f32
    %13 = vector.broadcast %cst_11 : f32 to vector<8x32xf32>
    %14 = arith.maximumf %12, %13 : vector<8x32xf32>
    %c0_12 = arith.constant 0 : index
    %c0_13 = arith.constant 0 : index
    %15 = vector.load %arg6[%c0_12, %c0_13] : memref<32x32xf32, #tpu.memory_space<vmem>>, vector<32x32xf32>
    %cst_14 = arith.constant dense<0.000000e+00> : vector<8x32xf32>
    %16 = tpu.matmul %14, %15, %cst_14 {dimension_numbers = #tpu.dot_dimension_numbers<[1], [0], [0], [1], [0, 0, 1, 1], [], []>} : vector<8x32xf32>, vector<32x32xf32>, vector<8x32xf32> -> vector<8x32xf32>
    %c0_15 = arith.constant 0 : index
    %c0_16 = arith.constant 0 : index
    %17 = vector.load %arg7[%c0_15, %c0_16] : memref<1x32xf32, #tpu.memory_space<vmem>>, vector<1x32xf32>
    %18 = vector.broadcast %17 : vector<1x32xf32> to vector<8x32xf32>
    %19 = arith.addf %16, %18 : vector<8x32xf32>
    %cst_17 = arith.constant 0.000000e+00 : f32
    %20 = vector.broadcast %cst_17 : f32 to vector<8x32xf32>
    %21 = arith.maximumf %19, %20 : vector<8x32xf32>
    %c0_18 = arith.constant 0 : index
    %c0_19 = arith.constant 0 : index
    %22 = vector.load %arg8[%c0_18, %c0_19] : memref<32x8xf32, #tpu.memory_space<vmem>>, vector<32x8xf32>
    %cst_20 = arith.constant dense<0.000000e+00> : vector<8x8xf32>
    %23 = tpu.matmul %21, %22, %cst_20 {dimension_numbers = #tpu.dot_dimension_numbers<[1], [0], [0], [1], [0, 0, 1, 1], [], []>} : vector<8x32xf32>, vector<32x8xf32>, vector<8x8xf32> -> vector<8x8xf32>
    %c0_21 = arith.constant 0 : index
    %c0_22 = arith.constant 0 : index
    %24 = vector.load %arg9[%c0_21, %c0_22] : memref<1x8xf32, #tpu.memory_space<vmem>>, vector<1x8xf32>
    %25 = vector.broadcast %24 : vector<1x8xf32> to vector<8x8xf32>
    %26 = arith.addf %23, %25 : vector<8x8xf32>
    %c0_23 = arith.constant 0 : index
    %c0_24 = arith.constant 0 : index
    %27 = vector.load %arg10[%c0_23, %c0_24] : memref<8x8xf32, #tpu.memory_space<vmem>>, vector<8x8xf32>
    tpu.vector_store %arg10[%c0_23, %c0_24], %26 {strides = array<i32>} : memref<8x8xf32, #tpu.memory_space<vmem>>, vector<8x8xf32>,
    return
  }
  func.func @transform_0(%arg0: i32) -> (i32, i32) {
    %c0_i32 = arith.constant 0 : i32
    %c0_i32_0 = arith.constant 0 : i32
    return %arg0, %c0_i32 : i32, i32
  }
  func.func @transform_1(%arg0: i32) -> (i32, i32) {
    %c0_i32 = arith.constant 0 : i32
    %c0_i32_0 = arith.constant 0 : i32
    %c0_i32_1 = arith.constant 0 : i32
    return %c0_i32, %c0_i32_0 : i32, i32
  }
  func.func @transform_2(%arg0: i32) -> (i32, i32) {
    %c0_i32 = arith.constant 0 : i32
    %c0_i32_0 = arith.constant 0 : i32
    %c0_i32_1 = arith.constant 0 : i32
    return %c0_i32, %c0_i32_0 : i32, i32
  }
  func.func @transform_3(%arg0: i32) -> (i32, i32) {
    %c0_i32 = arith.constant 0 : i32
    %c0_i32_0 = arith.constant 0 : i32
    %c0_i32_1 = arith.constant 0 : i32
    return %c0_i32, %c0_i32_0 : i32, i32
  }
  func.func @transform_4(%arg0: i32) -> (i32, i32) {
    %c0_i32 = arith.constant 0 : i32
    %c0_i32_0 = arith.constant 0 : i32
    %c0_i32_1 = arith.constant 0 : i32
    return %c0_i32, %c0_i32_0 : i32, i32
  }
  func.func @transform_5(%arg0: i32) -> (i32, i32) {
    %c0_i32 = arith.constant 0 : i32
    %c0_i32_0 = arith.constant 0 : i32
    %c0_i32_1 = arith.constant 0 : i32
    return %c0_i32, %c0_i32_0 : i32, i32
  }
  func.func @transform_6(%arg0: i32) -> (i32, i32) {
    %c0_i32 = arith.constant 0 : i32
    %c0_i32_0 = arith.constant 0 : i32
    %c0_i32_1 = arith.constant 0 : i32
    return %c0_i32, %c0_i32_0 : i32, i32
  }
  func.func @transform_7(%arg0: i32) -> (i32, i32) {
    %c0_i32 = arith.constant 0 : i32
    %c0_i32_0 = arith.constant 0 : i32
    %c0_i32_1 = arith.constant 0 : i32
    return %c0_i32, %c0_i32_0 : i32, i32
  }
  func.func @transform_8(%arg0: i32) -> (i32, i32) {
    %c0_i32 = arith.constant 0 : i32
    %c0_i32_0 = arith.constant 0 : i32
    %c0_i32_1 = arith.constant 0 : i32
    return %c0_i32, %c0_i32_0 : i32, i32
  }
  func.func @transform_9(%arg0: i32) -> (i32, i32) {
    %c0_i32 = arith.constant 0 : i32
    %c0_i32_0 = arith.constant 0 : i32
    return %arg0, %c0_i32 : i32, i32
  }
}

</mosaic_0001>

<llo_original>
// kernel: tpu_custom_call.1
$region0: #{tpu_custom_call.1}
  #allocation0 [shape = 'u32[]', space=smem, size = 0x4, offset = 0x4, fixed_abs, tag = 'smem constant byte address 0x4 - core index']
  #allocation1 [shape = 'u32[72,128]{1,0:T(1,128)}', space=vmem, size = 0x9000, scoped, tag = 'internal scratch']
  %s0 = inlined_call_operand.vmem [shape: f32[8,16], index: 0, kind: input, shape index: {}]
  %s1 = inlined_call_operand.hbm [shape: f32[16,32], index: 1, kind: input, shape index: {}]
  %s2 = inlined_call_operand.vmem [shape: f32[1,32], index: 2, kind: input, shape index: {}]
  %s3 = inlined_call_operand.vmem [shape: f32[32,32], index: 3, kind: input, shape index: {}]
  %s4 = inlined_call_operand.vmem [shape: f32[1,32], index: 4, kind: input, shape index: {}]
  %s5 = inlined_call_operand.hbm [shape: f32[32,32], index: 5, kind: input, shape index: {}]
  %s6 = inlined_call_operand.vmem [shape: f32[1,32], index: 6, kind: input, shape index: {}]
  %s7 = inlined_call_operand.vmem [shape: f32[32,8], index: 7, kind: input, shape index: {}]
  %s8 = inlined_call_operand.vmem [shape: f32[1,8], index: 8, kind: input, shape index: {}]
  %s9 = inlined_call_operand.hbm [shape: f32[8,8], index: 9, kind: output, shape index: {}]
  %s10 = sld [smem:[#allocation0]]
  $region54: #{tpu_custom_call.1} parent=0
    _
  %s12 = ssub.s32 1, %s10
  %s13 = scalar_select 0, %s12, %s10
  $region1: #{tpu_custom_call.1} parent=0
    #allocation2 [shape = 'u8[8192]{0}', space=vmem, size = 0x2000, scoped, tag = 'input window, operand 1, single buffered']
    #allocation3 [shape = 's32[1]{0}', space=sflag, size = 0x4, scoped, tag = 'scoped memory for tpu_custom_call.1']
    #allocation4 [shape = 's32[1]{0}', space=sflag, size = 0x4, scoped, tag = 'scoped memory for tpu_custom_call.1']
    #allocation5 [shape = 'u8[16384]{0}', space=vmem, size = 0x4000, scoped, tag = 'input window, operand 5, single buffered']
    #allocation6 [shape = 's32[1]{0}', space=sflag, size = 0x4, scoped, tag = 'scoped memory for tpu_custom_call.1']
    #allocation7 [shape = 'u8[4096]{0}', space=vmem, size = 0x1000, scoped, tag = 'output window, operand 0, single buffered']
    %14 = vsyncpa [#allocation3], 0
    %15 = vsyncpa [#allocation6], 0
    %16 = vsyncpa [#allocation4], 0
    // Predicated region
    $region2: #{tpu_custom_call.1} parent=1 // pred_check
      _
    $region3: #{tpu_custom_call.1} parent=1 // pred_check_branch
      %18 = sbr.rel (0) target = $region5
    $region4: #{tpu_custom_call.1} parent=1 // pred_region
      _
    $region5: #{tpu_custom_call.1} parent=1 // pred_fallthru
      _
    // Predicated region
    $region6: #{tpu_custom_call.1} parent=1 // pred_check
      _
    $region7: #{tpu_custom_call.1} parent=1 // pred_check_branch
      %20 = sbr.rel (0) target = $region9
    $region8: #{tpu_custom_call.1} parent=1 // pred_region
      %22 = vsyncadd [#allocation3], 0
      %s23 = sshll.u32 %s1, 4
      %s24 = int_to_ptr.hbm [resolvable:$true] %s23
      %s25 = sshll.u32 [#allocation2], 4
      %s26 = int_to_ptr.vmem [resolvable:$true] %s25
      %31 = dma.hbm_to_vmem [thread:$0]  %s24, 256, %s26, [#allocation3], 128, 128, 8
    $region9: #{tpu_custom_call.1} parent=1 // pred_fallthru
      _
    // Predicated region
    $region10: #{tpu_custom_call.1} parent=1 // pred_check
      _
    $region11: #{tpu_custom_call.1} parent=1 // pred_check_branch
      %33 = sbr.rel (0) target = $region13
    $region12: #{tpu_custom_call.1} parent=1 // pred_region
      _
    $region13: #{tpu_custom_call.1} parent=1 // pred_fallthru
      _
    // Predicated region
    $region14: #{tpu_custom_call.1} parent=1 // pred_check
      _
    $region15: #{tpu_custom_call.1} parent=1 // pred_check_branch
      %35 = sbr.rel (0) target = $region17
    $region16: #{tpu_custom_call.1} parent=1 // pred_region
      _
    $region17: #{tpu_custom_call.1} parent=1 // pred_fallthru
      _
    // Predicated region
    $region18: #{tpu_custom_call.1} parent=1 // pred_check
      _
    $region19: #{tpu_custom_call.1} parent=1 // pred_check_branch
      %37 = sbr.rel (0) target = $region21
    $region20: #{tpu_custom_call.1} parent=1 // pred_region
      _
    $region21: #{tpu_custom_call.1} parent=1 // pred_fallthru
      _
    // Predicated region
    $region22: #{tpu_custom_call.1} parent=1 // pred_check
      _
    $region23: #{tpu_custom_call.1} parent=1 // pred_check_branch
      %39 = sbr.rel (0) target = $region25
    $region24: #{tpu_custom_call.1} parent=1 // pred_region
      %41 = vsyncadd [#allocation6], 0
      %s42 = sshll.u32 %s5, 4
      %s43 = int_to_ptr.hbm [resolvable:$true] %s42
      %s44 = sshll.u32 [#allocation5], 4
      %s45 = int_to_ptr.vmem [resolvable:$true] %s44
      %50 = dma.hbm_to_vmem [thread:$0]  %s43, 512, %s45, [#allocation6], 128, 128, 8
    $region25: #{tpu_custom_call.1} parent=1 // pred_fallthru
      _
    // Predicated region
    $region26: #{tpu_custom_call.1} parent=1 // pred_check
      _
    $region27: #{tpu_custom_call.1} parent=1 // pred_check_branch
      %52 = sbr.rel (0) target = $region29
    $region28: #{tpu_custom_call.1} parent=1 // pred_region
      _
    $region29: #{tpu_custom_call.1} parent=1 // pred_fallthru
      _
    // Predicated region
    $region30: #{tpu_custom_call.1} parent=1 // pred_check
      _
    $region31: #{tpu_custom_call.1} parent=1 // pred_check_branch
      %54 = sbr.rel (0) target = $region33
    $region32: #{tpu_custom_call.1} parent=1 // pred_region
      _
    $region33: #{tpu_custom_call.1} parent=1 // pred_fallthru
      _
    // Predicated region
    $region34: #{tpu_custom_call.1} parent=1 // pred_check
      _
    $region35: #{tpu_custom_call.1} parent=1 // pred_check_branch
      %56 = sbr.rel (0) target = $region37
    $region36: #{tpu_custom_call.1} parent=1 // pred_region
      _
    $region37: #{tpu_custom_call.1} parent=1 // pred_fallthru
      _
    // Predicated region
    $region38: #{tpu_custom_call.1} parent=1 // pred_check
      _
    $region39: #{tpu_custom_call.1} parent=1 // pred_check_branch
      %58 = sbr.rel (0) target = $region41
    $region40: #{tpu_custom_call.1} parent=1 // pred_region
      %60 = dma.done [#allocation3], 256
    $region41: #{tpu_custom_call.1} parent=1 // pred_fallthru
      _
    // Predicated region
    $region42: #{tpu_custom_call.1} parent=1 // pred_check
      _
    $region43: #{tpu_custom_call.1} parent=1 // pred_check_branch
      %62 = sbr.rel (0) target = $region45
    $region44: #{tpu_custom_call.1} parent=1 // pred_region
      %64 = dma.done [#allocation6], 512
    $region45: #{tpu_custom_call.1} parent=1 // pred_fallthru
      _
    %v65 = vld [vmem:[%s0] sm:$0xff]
    %v66 = vld [vmem:[#allocation2] sm:$0xff]
    %v67 = vld [vmem:[#allocation2 + $0x8] sm:$0xff]
    %v68 = vld [vmem:[%s2] sm:$0x1]
    %v70 = vperm.slane %v68, 0
    %vm72 = vcmask 130048
    %v74 = vsel %vm72, %v65, 0
    %76 = vmatpush.msra.mxu0 0.0
    %77 = vmatpush.msra.mxu0 0.0
    %78 = vmatpush.msra.mxu0 0.0
    %79 = vmatpush.msra.mxu0 0.0
    %80 = vmatpush.msra.mxu0 0.0
    %81 = vmatpush.msra.mxu0 0.0
    %82 = vmatpush.msra.mxu0 0.0
    %83 = vmatpush.msra.mxu0 0.0
    %84 = vmatpush.msra.mxu0 0.0
    %85 = vmatpush.msra.mxu0 0.0
    %86 = vmatpush.msra.mxu0 0.0
    %87 = vmatpush.msra.mxu0 0.0
    %88 = vmatpush.msra.mxu0 0.0
    %89 = vmatpush.msra.mxu0 0.0
    %90 = vmatpush.msra.mxu0 %v67
    %91 = vmatpush.msra.mxu0 %v66
    %92 = vmatmul.f32.gmra.mxu0 %v74
    %v93 = vpop.f32.mrf.mxu0
    %v94 = vadd.f32 %v70, %v93
    %95 = vdwg.mxu0
    %v96 = vmax.f32 %v94, 0.0
    %v97 = vld [vmem:[%s3] sm:$0xff]
    %v98 = vld [vmem:[%s3 + $0x8] sm:$0xff]
    %v99 = vld [vmem:[%s3 + $0x10] sm:$0xff]
    %v100 = vld [vmem:[%s3 + $0x18] sm:$0xff]
    %v101 = vld [vmem:[%s4] sm:$0x1]
    %v103 = vperm.slane %v101, 0
    %vm105 = vcmask 261120
    %v107 = vsel %vm105, %v96, 0
    %109 = vmatpush.msra.mxu0 0.0
    %110 = vmatpush.msra.mxu0 0.0
    %111 = vmatpush.msra.mxu0 0.0
    %112 = vmatpush.msra.mxu0 0.0
    %113 = vmatpush.msra.mxu0 0.0
    %114 = vmatpush.msra.mxu0 0.0
    %115 = vmatpush.msra.mxu0 0.0
    %116 = vmatpush.msra.mxu0 0.0
    %117 = vmatpush.msra.mxu0 0.0
    %118 = vmatpush.msra.mxu0 0.0
    %119 = vmatpush.msra.mxu0 0.0
    %120 = vmatpush.msra.mxu0 0.0
    %121 = vmatpush.msra.mxu0 %v100
    %122 = vmatpush.msra.mxu0 %v99
    %123 = vmatpush.msra.mxu0 %v98
    %124 = vmatpush.msra.mxu0 %v97
    %125 = vmatmul.f32.gmra.mxu0 %v107
    %v126 = vpop.f32.mrf.mxu0
    %v127 = vadd.f32 %v103, %v126
    %128 = vdwg.mxu0
    %v129 = vmax.f32 %v127, 0.0
    %v130 = vld [vmem:[#allocation5] sm:$0xff]
    %v131 = vld [vmem:[#allocation5 + $0x8] sm:$0xff]
    %v132 = vld [vmem:[#allocation5 + $0x10] sm:$0xff]
    %v133 = vld [vmem:[#allocation5 + $0x18] sm:$0xff]
    %v134 = vld [vmem:[%s6] sm:$0x1]
    %v136 = vperm.slane %v134, 0
    %v139 = vsel %vm105, %v129, 0
    %141 = vmatpush.msra.mxu0 0.0
    %142 = vmatpush.msra.mxu0 0.0
    %143 = vmatpush.msra.mxu0 0.0
    %144 = vmatpush.msra.mxu0 0.0
    %145 = vmatpush.msra.mxu0 0.0
    %146 = vmatpush.msra.mxu0 0.0
    %147 = vmatpush.msra.mxu0 0.0
    %148 = vmatpush.msra.mxu0 0.0
    %149 = vmatpush.msra.mxu0 0.0
    %150 = vmatpush.msra.mxu0 0.0
    %151 = vmatpush.msra.mxu0 0.0
    %152 = vmatpush.msra.mxu0 0.0
    %153 = vmatpush.msra.mxu0 %v133
    %154 = vmatpush.msra.mxu0 %v132
    %155 = vmatpush.msra.mxu0 %v131
    %156 = vmatpush.msra.mxu0 %v130
    %157 = vmatmul.f32.gmra.mxu0 %v139
    %v158 = vpop.f32.mrf.mxu0
    %v159 = vadd.f32 %v136, %v158
    %160 = vdwg.mxu0
    %v161 = vmax.f32 %v159, 0.0
    %v162 = vld [vmem:[%s7] sm:$0xff]
    %v163 = vld [vmem:[%s7 + $0x8] sm:$0xff]
    %v164 = vld [vmem:[%s7 + $0x10] sm:$0xff]
    %v165 = vld [vmem:[%s7 + $0x18] sm:$0xff]
    %v166 = vld [vmem:[%s8] sm:$0x1]
    %v168 = vperm.slane %v166, 0
    %v171 = vsel %vm105, %v161, 0
    %173 = vmatpush.msra.mxu0 0.0
    %174 = vmatpush.msra.mxu0 0.0
    %175 = vmatpush.msra.mxu0 0.0
    %176 = vmatpush.msra.mxu0 0.0
    %177 = vmatpush.msra.mxu0 0.0
    %178 = vmatpush.msra.mxu0 0.0
    %179 = vmatpush.msra.mxu0 0.0
    %180 = vmatpush.msra.mxu0 0.0
    %181 = vmatpush.msra.mxu0 0.0
    %182 = vmatpush.msra.mxu0 0.0
    %183 = vmatpush.msra.mxu0 0.0
    %184 = vmatpush.msra.mxu0 0.0
    %185 = vmatpush.msra.mxu0 %v165
    %186 = vmatpush.msra.mxu0 %v164
    %187 = vmatpush.msra.mxu0 %v163
    %188 = vmatpush.msra.mxu0 %v162
    %189 = vmatmul.f32.gmra.mxu0 %v171
    %v190 = vpop.f32.mrf.mxu0
    %v191 = vadd.f32 %v168, %v190
    %192 = vdwg.mxu0
    %vm193 = vcmask 64512
    %194 = vst.msk [vmem:[#allocation7] sm:$0xff] %vm193, %v191
    // Predicated region
    $region46: #{tpu_custom_call.1} parent=1 // pred_check
      _
    $region47: #{tpu_custom_call.1} parent=1 // pred_check_branch
      %196 = sbr.rel (0) target = $region49
    $region48: #{tpu_custom_call.1} parent=1 // pred_region
      %198 = vsyncadd [#allocation4], 0
      %s200 = sshll.u32 [#allocation7], 4
      %s201 = int_to_ptr.vmem [resolvable:$true] %s200
      %s202 = sshll.u32 %s9, 4
      %s203 = int_to_ptr.hbm [resolvable:$true] %s202
      %205 = dma.vmem_to_hbm [thread:$0]  %s201, 128, %s203, [#allocation4]
    $region49: #{tpu_custom_call.1} parent=1 // pred_fallthru
      _
    // Predicated region
    $region50: #{tpu_custom_call.1} parent=1 // pred_check
      _
    $region51: #{tpu_custom_call.1} parent=1 // pred_check_branch
      %207 = sbr.rel (0) target = $region53
    $region52: #{tpu_custom_call.1} parent=1 // pred_region
      %209 = dma.done [#allocation4], 128
    $region53: #{tpu_custom_call.1} parent=1 // pred_fallthru
      _
    %210 = vsyncpa [#allocation3], 1
    %211 = vsyncpa [#allocation6], 1
    %212 = vsyncpa [#allocation4], 1

</llo_original>
